<compile_context>
chip_gen: v6e
topology: v6e:2x2x1
jax: 0.10.0
libtpu: 0.0.40
codegen_flags: <defaults>
</compile_context>

<pallas_src>
import math
from functools import partial

import jax
import jax.numpy as jnp
from jax.experimental import pallas as pl
from jax.experimental.pallas import tpu as pltpu

_VMEM_LIMIT = 64 * 1024 * 1024


def _round_up(x, m):
    return (x + m - 1) // m * m


# ----------------------------------------------------------------------------
# padded-grid / lane-layout helpers (host side)
# ----------------------------------------------------------------------------
def _pad_margin(x):
    """(B, C, H, W) -> (B, C, Nt): zero-padded (H+2, W+2) grid flattened on the
    lane axis plus M = Wp+1 zero margin lanes on each side so every 3x3 tap is
    a non-negative static lane offset."""
    B, C, H, W = x.shape
    Hp, Wp = H + 2, W + 2
    Np = Hp * Wp
    M = Wp + 1
    xp = jnp.pad(x, ((0, 0), (0, 0), (1, 1), (1, 1))).reshape(B, C, Np)
    xp = jnp.pad(xp, ((0, 0), (0, 0), (M, M)))
    return xp, Np, Wp, M


def _interior(y, H, W):
    """(B, C, Np) padded-grid map -> (B, C, H, W)."""
    B, C, _ = y.shape
    return y.reshape(B, C, H + 2, W + 2)[:, :, 1:H + 1, 1:W + 1]


def _pad_channels(x, mult=8):
    C = x.shape[1]
    C8 = _round_up(C, mult)
    if C8 == C:
        return x
    return jnp.pad(x, ((0, 0), (0, C8 - C), (0, 0), (0, 0)))


def _w3x3_flat(w, cin_pad):
    """(Cout, Cin, 3, 3) -> (Cout, 9*cin_pad) with K index (kh*3+kw)*cin_pad+ci."""
    Cout, Cin, KH, KW = w.shape
    if cin_pad != Cin:
        w = jnp.pad(w, ((0, 0), (0, cin_pad - Cin), (0, 0), (0, 0)))
    return jnp.transpose(w, (0, 2, 3, 1)).reshape(Cout, KH * KW * cin_pad)


def _tap_offsets(wp, margin):
    return [margin + (kh - 1) * wp + (kw - 1)
            for kh in range(3) for kw in range(3)]


def _act(y, activation):
    if activation == "relu":
        return jnp.maximum(y, 0.0)
    if activation == "sigmoid":
        return 1.0 / (1.0 + jnp.exp(-y))
    return y


# ----------------------------------------------------------------------------
# Kernel 1: standalone 3x3 conv (single big-K MXU matmul, taps built in VMEM)
# ----------------------------------------------------------------------------
def _conv3x3_kernel(x_ref, w_ref, b_ref, o_ref, xk_s,
                    *, np_len, wp, margin, cin, activation):
    offs = _tap_offsets(wp, margin)
    for t, o in enumerate(offs):
        xk_s[t * cin:(t + 1) * cin, :] = x_ref[0, :, o:o + np_len]
    y = jnp.dot(w_ref[...], xk_s[...],
                preferred_element_type=jnp.float32) + b_ref[...]
    o_ref[0] = _act(y, activation)


@partial(jax.jit, static_argnames=("activation",))
def _conv3x3_call(w, b, x, *, activation="none"):
    B, Cin, H, W = x.shape
    Cout = w.shape[0]
    Cin8 = _round_up(Cin, 8)
    xm, Np, Wp, M = _pad_margin(_pad_channels(x))
    Nt = xm.shape[-1]
    wk = _w3x3_flat(w, Cin8).astype(jnp.float32)
    bb = (jnp.zeros((Cout, 1), jnp.float32) if b is None
          else b.reshape(Cout, 1).astype(jnp.float32))
    kernel = partial(_conv3x3_kernel, np_len=Np, wp=Wp, margin=M,
                     cin=Cin8, activation=activation)
    out = pl.pallas_call(
        kernel,
        out_shape=jax.ShapeDtypeStruct((B, Cout, Np), jnp.float32),
        grid=(B,),
        in_specs=[
            pl.BlockSpec((1, Cin8, Nt), lambda i: (i, 0, 0)),
            pl.BlockSpec((Cout, 9 * Cin8), lambda i: (0, 0)),
            pl.BlockSpec((Cout, 1), lambda i: (0, 0)),
        ],
        out_specs=pl.BlockSpec((1, Cout, Np), lambda i: (i, 0, 0)),
        scratch_shapes=[pltpu.VMEM((9 * Cin8, Np), jnp.float32)],
        compiler_params=pltpu.CompilerParams(
            dimension_semantics=("parallel",),
            vmem_limit_bytes=_VMEM_LIMIT),
    )(xm.astype(jnp.float32), wk, bb)
    return _interior(out, H, W)


# ----------------------------------------------------------------------------
# Kernel 2: 1x1 conv -- HW-tiled bf16 matmul, f32 accumulation, fused act
# ----------------------------------------------------------------------------
def _conv1x1_kernel(x_ref, w_ref, b_ref, o_ref, *, activation):
    x = x_ref[0]
    w = w_ref[...]
    if w.shape[1] == 1:                         # degenerate K=1: VPU broadcast
        y = w.astype(jnp.float32) * x.astype(jnp.float32)
    else:
        y = jnp.dot(w, x, preferred_element_type=jnp.float32)
    o_ref[0] = _act(y + b_ref[...], activation)


@partial(jax.jit, static_argnames=("activation",))
def _conv1x1_call(w, b, x, *, activation="none"):
    B, Cin, H, W = x.shape
    w2 = w.reshape(w.shape[0], Cin)
    Cout = w2.shape[0]
    HW = H * W
    tile = min(_round_up(HW, 128), 2048)
    HWp = _round_up(HW, tile)
    xf = x.reshape(B, Cin, HW)
    if HWp != HW:
        xf = jnp.pad(xf, ((0, 0), (0, 0), (0, HWp - HW)))
    bb = (jnp.zeros((Cout, 1), jnp.float32) if b is None
          else b.reshape(Cout, 1).astype(jnp.float32))
    out = pl.pallas_call(
        partial(_conv1x1_kernel, activation=activation),
        out_shape=jax.ShapeDtypeStruct((B, Cout, HWp), jnp.float32),
        grid=(B, HWp // tile),
        in_specs=[
            pl.BlockSpec((1, Cin, tile), lambda i, j: (i, 0, j)),
            pl.BlockSpec((Cout, Cin), lambda i, j: (0, 0)),
            pl.BlockSpec((Cout, 1), lambda i, j: (0, 0)),
        ],
        out_specs=pl.BlockSpec((1, Cout, tile), lambda i, j: (i, 0, j)),
        compiler_params=pltpu.CompilerParams(
            dimension_semantics=("parallel", "parallel"),
            vmem_limit_bytes=_VMEM_LIMIT),
    )(xf.astype(jnp.bfloat16), w2.astype(jnp.bfloat16), bb)
    return out[:, :, :HW].reshape(B, Cout, H, W)


def conv2d(w, x, bias=None, activation="none"):
    """Dispatch a PyTorch-style conv weight (Cout, Cin, KH, KW) in NCHW."""
    if w.shape[2] == 1 and w.shape[3] == 1:
        return _conv1x1_call(w, bias, x, activation=activation)
    return _conv3x3_call(w, bias, x, activation=activation)


# ----------------------------------------------------------------------------
# Kernel 3: depthwise 3x3 conv (KBBlock) -- 9 VPU FMAs per pixel, MXU-free
# ----------------------------------------------------------------------------
def _dw3x3_kernel(x_ref, w_ref, b_ref, o_ref, *, np_len, wp, margin):
    offs = _tap_offsets(wp, margin)
    acc = x_ref[0, :, offs[0]:offs[0] + np_len] * w_ref[0]
    for t in range(1, 9):
        o = offs[t]
        acc = acc + x_ref[0, :, o:o + np_len] * w_ref[t]
    o_ref[0] = acc + b_ref[...]


@jax.jit
def _dwconv3x3_call(w, b, x):
    # w: (C, 1, 3, 3) grouped(=C) weight, b: (C,), x: (B, C, H, W)
    B, C, H, W = x.shape
    xm, Np, Wp, M = _pad_margin(x)
    Nt = xm.shape[-1]
    wk = jnp.transpose(w[:, 0], (1, 2, 0)).reshape(9, C, 1).astype(jnp.float32)
    bb = b.reshape(C, 1).astype(jnp.float32)
    out = pl.pallas_call(
        partial(_dw3x3_kernel, np_len=Np, wp=Wp, margin=M),
        out_shape=jax.ShapeDtypeStruct((B, C, Np), jnp.float32),
        grid=(B,),
        in_specs=[
            pl.BlockSpec((1, C, Nt), lambda i: (i, 0, 0)),
            pl.BlockSpec((9, C, 1), lambda i: (0, 0, 0)),
            pl.BlockSpec((C, 1), lambda i: (0, 0)),
        ],
        out_specs=pl.BlockSpec((1, C, Np), lambda i: (i, 0, 0)),
        compiler_params=pltpu.CompilerParams(
            dimension_semantics=("parallel",),
            vmem_limit_bytes=_VMEM_LIMIT),
    )(xm.astype(jnp.float32), wk, bb)
    return _interior(out, H, W)


# ----------------------------------------------------------------------------
# Kernel 4: fully fused Edge_net (conv1 + ResidualB + 2x DenseB + ResidualB +
# conv2), all activations resident in VMEM scratch, one pallas_call per batch
# ----------------------------------------------------------------------------
def _edge_net_kernel(x_ref, w72_ref, wd_ref, w2_ref, m_ref, o_ref,
                     xs, hs, ts, x1s, x2s, x3s, x4s, xk1, xk4,
                     *, np_len, wp, margin):
    offs = _tap_offsets(wp, margin)
    mask = m_ref[...]                                     # (1, Np)

    def conv_from(refs, w, relu):
        n = len(refs)
        xk = xk1 if n == 1 else xk4
        ctot = 8 * n
        for t, o in enumerate(offs):
            for j, r in enumerate(refs):
                xk[t * ctot + j * 8:t * ctot + (j + 1) * 8, :] = \
                    r[:, o:o + np_len]
        y = jnp.dot(w, xk[...], preferred_element_type=jnp.float32) * mask
        return jnp.maximum(y, 0.0) if relu else y

    def put(dst, y):
        dst[:, margin:margin + np_len] = y

    def interior(r):
        return r[:, margin:margin + np_len]

    # zero scratch so margins / pad border always read as zero-padding
    for s in (hs, ts, x1s, x2s, x3s, x4s):
        s[...] = jnp.zeros(s.shape, jnp.float32)
    xs[...] = x_ref[0]

    def residual(wi, src):
        h = conv_from([src], w72_ref[wi], relu=True)
        put(hs, h)
        h = conv_from([hs], w72_ref[wi + 1], relu=False)
        return h + interior(src)

    put(xs, conv_from([xs], w72_ref[0], relu=True))       # conv1 + ReLU
    put(xs, residual(1, xs))                              # ResidualB r1

    wi = 3
    for di in range(2):                                   # two DenseB blocks
        xv = interior(xs)
        x1 = residual(wi + 0, xs)
        put(x1s, x1)
        put(ts, x1 + xv)
        x2 = residual(wi + 2, ts)
        put(x2s, x2)
        put(ts, x2 + x1 + xv)
        x3 = residual(wi + 4, ts)
        put(x3s, x3)
        put(ts, x3 + x2 + x1 + xv)
        x4 = residual(wi + 6, ts)
        put(x4s, x4)
        out = conv_from([x1s, x2s, x3s, x4s], wd_ref[di], relu=True)
        put(xs, out + xv)
        wi += 8

    put(xs, residual(wi, xs))                             # ResidualB r2
    o_ref[0] = conv_from([xs], w2_ref[...], relu=True)    # conv2 + ReLU


@jax.jit
def _edge_net_call(p, x):
    # x: (B, 5, H, W) -> (B, 5, H, W)
    B, _, H, W = x.shape
    xm, Np, Wp, M = _pad_margin(_pad_channels(x))         # (B, 8, Nt)
    Nt = xm.shape[-1]
    Hp = H + 2
    mask = jnp.zeros((Hp, Wp), jnp.float32)
    mask = mask.at[1:H + 1, 1:W + 1].set(1.0).reshape(1, Np)

    res_ws = [p["r1"]["c1"], p["r1"]["c2"]]
    for d in ("d1", "d2"):
        for r in ("res1", "res2", "res3", "res4"):
            res_ws += [p[d][r]["c1"], p[d][r]["c2"]]
    res_ws += [p["r2"]["c1"], p["r2"]["c2"]]
    w72 = jnp.stack([_w3x3_flat(p["conv1"], 8)]
                    + [_w3x3_flat(w, 8) for w in res_ws]).astype(jnp.float32)
    wd = jnp.stack([_w3x3_flat(p["d1"]["conv"], 32),
                    _w3x3_flat(p["d2"]["conv"], 32)]).astype(jnp.float32)
    w2 = _w3x3_flat(p["conv2"], 8).astype(jnp.float32)

    out = pl.pallas_call(
        partial(_edge_net_kernel, np_len=Np, wp=Wp, margin=M),
        out_shape=jax.ShapeDtypeStruct((B, 5, Np), jnp.float32),
        grid=(B,),
        in_specs=[
            pl.BlockSpec((1, 8, Nt), lambda i: (i, 0, 0)),
            pl.BlockSpec((21, 8, 72), lambda i: (0, 0, 0)),
            pl.BlockSpec((2, 8, 288), lambda i: (0, 0, 0)),
            pl.BlockSpec((5, 72), lambda i: (0, 0)),
            pl.BlockSpec((1, Np), lambda i: (0, 0)),
        ],
        out_specs=pl.BlockSpec((1, 5, Np), lambda i: (i, 0, 0)),
        scratch_shapes=(
            [pltpu.VMEM((8, Nt), jnp.float32) for _ in range(7)]
            + [pltpu.VMEM((72, Np), jnp.float32),
               pltpu.VMEM((288, Np), jnp.float32)]),
        compiler_params=pltpu.CompilerParams(
            dimension_semantics=("parallel",),
            vmem_limit_bytes=_VMEM_LIMIT),
    )(xm.astype(jnp.float32), w72, wd, w2, mask)
    return _interior(out, H, W)


# ----------------------------------------------------------------------------
# Fixed Sobel filters + MakeEdgeBins
# ----------------------------------------------------------------------------
_SOBEL_W = jnp.array(
    [[[[1., 0., -1.], [2., 0., -2.], [1., 0., -1.]]],
     [[[-1., 0., 1.], [-2., 0., 2.], [-1., 0., 1.]]],
     [[[-1., -2., -1.], [0., 0., 0.], [1., 2., 1.]]],
     [[[1., 2., 1.], [0., 0., 0.], [-1., -2., -1.]]]], dtype=jnp.float32)


def make_edge_bins(x):
    """MakeEdgeBins: x (B,1,H,W) -> (B,4,H,W). Matches the reference's global
    (batch-wide) min/max normalization."""
    edges = conv2d(_SOBEL_W, x)
    mn, mx = jnp.min(edges), jnp.max(edges)
    edges = (edges - mn) * (1.0 / (mx - mn))
    bins = [x * (edges[:, i:i + 1] < 0.4).astype(jnp.float32) for i in range(4)]
    return jnp.concatenate(bins, axis=1)


# ----------------------------------------------------------------------------
# KBBlock_s pieces (JAX glue around the Pallas conv kernels)
# ----------------------------------------------------------------------------
def layernorm2d(weight, bias, x, eps=1e-6):
    mu = jnp.mean(x, axis=1, keepdims=True)
    var = jnp.mean((x - mu) ** 2, axis=1, keepdims=True)
    y = (x - mu) / jnp.sqrt(var + eps)
    return y * weight[None, :, None, None] + bias[None, :, None, None]


def simple_gate(x):
    c = x.shape[1] // 2
    return x[:, :c] * x[:, c:]


def kba(x, att, k, g, b_p, w_p):
    """KBAFunction forward: per-pixel dynamic grouped conv (plain JAX)."""
    B, c, H, W = x.shape
    nset = att.shape[1]
    KK = k * k
    att2 = att.reshape(B, nset, H * W).transpose(0, 2, 1)          # (B,HW,nset)
    bias = jnp.einsum("bpn,nc->bpc", att2, b_p[0])                 # (B,HW,c)
    attk = jnp.einsum("bpn,nm->bpm", att2, w_p[0])                 # (B,HW,c*(c//g)*KK)
    ph = k // 2
    xp = jnp.pad(x, ((0, 0), (0, 0), (ph, ph), (ph, ph)))
    cols = [xp[:, :, kh:kh + H, kw:kw + W] for kh in range(k) for kw in range(k)]
    uf = jnp.stack(cols, axis=2)                                   # (B,c,KK,H,W)
    uf = uf.reshape(B, c * KK, H * W)                              # F.unfold order
    uf = uf.reshape(B, g, (c // g) * KK, H * W).transpose(0, 3, 1, 2)
    attk = attk.reshape(B, H * W, g, c // g, (c // g) * KK)
    out = jnp.einsum("bpgok,bpgk->bpgo", attk, uf)
    out = out.reshape(B, H * W, c) + bias
    return out.transpose(0, 2, 1).reshape(B, c, H, W)


def kbblock(p, inp):
    c = inp.shape[1]
    x = layernorm2d(p["norm1_w"], p["norm1_b"], inp)
    pooled = jnp.mean(x, axis=(2, 3))                              # sca: GAP + 1x1
    sca = pooled @ p["sca_w"].reshape(c, c).T + p["sca_b"]
    sca = sca[:, :, None, None]
    x1 = conv2d(p["conv11_0_w"], x, bias=p["conv11_0_b"])
    x1 = _dwconv3x3_call(p["conv11_1_w"], p["conv11_1_b"], x1)
    a = _dwconv3x3_call(p["conv2_0_w"], p["conv2_0_b"], x)
    a = simple_gate(a)
    a = conv2d(p["conv2_2_w"], a, bias=p["conv2_2_b"])
    att = a * p["attgamma"] + conv2d(p["conv211_w"], x, bias=p["conv211_b"])
    uf = conv2d(p["conv1_w"], x, bias=p["conv1_b"])
    uf = _dwconv3x3_call(p["conv21_w"], p["conv21_b"], uf)
    z = kba(uf, att, 3, 1, p["kb_b"], p["kb_w"]) * p["ga1"] + uf
    z = z * x1 * sca
    z = conv2d(p["conv3_w"], z, bias=p["conv3_b"])
    y = inp + z * p["beta"]
    z = layernorm2d(p["norm2_w"], p["norm2_b"], y)
    z = conv2d(p["conv4_w"], z, bias=p["conv4_b"])
    z = simple_gate(z)
    z = conv2d(p["conv5_w"], z, bias=p["conv5_b"])
    return y + z * p["gamma"]


# ----------------------------------------------------------------------------
# SemanticFusion
# ----------------------------------------------------------------------------
def semantic_fusion(p, x, masks):
    x_res = conv2d(p["conv_w"], x)                                 # in_c -> 3
    m = conv2d(p["mask_conv_w"], masks)                            # 3 -> 3
    mask_ch = jnp.mean(m, axis=(2, 3), keepdims=True)              # AdaptiveAvgPool3d(1)
    mask_fe = 1.0 / (1.0 + jnp.exp(-(masks * mask_ch)))
    kba_in = conv2d(p["fconv1_w"], x)                              # in_c -> 6
    kba_out = kbblock(p["kba"], kba_in)
    bnn_in = conv2d(p["fconv2_w"], kba_out)                        # 6 -> 6
    # TODO(synk): `create_bnn` is undefined in the reference source; the
    # per-channel bilateral networks are treated as identity here.
    bnn_out = bnn_in
    bnn_out = conv2d(p["bconv_w"], bnn_out)                        # 6 -> 3
    out = bnn_out * mask_fe + x_res
    out = conv2d(p["fe_conv0_w"], out)                             # 3 -> 3
    out = conv2d(p["fe_conv1_w"], out)                             # 3 -> 1
    return out


# ----------------------------------------------------------------------------
# BilateralDeepNet forward
# ----------------------------------------------------------------------------
def bilateral_deep_net(p, x5, masks5):
    # x5: (B,1,1,H,W), masks5: (B,3,1,H,W)  -- NCDHW with D=1
    x = x5[:, :, 0]                                                # (B,1,H,W)
    masks = masks5[:, :, 0]                                        # (B,3,H,W)
    ebs = make_edge_bins(x)                                        # (B,4,H,W)
    # TODO(synk): CannyEdgeDetector uses cv2.GaussianBlur + cv2.Canny (CPU /
    # OpenCV); no JAX/Pallas equivalent, so detail_e is a zero map here.
    detail_e = jnp.zeros_like(x)                                   # (B,1,H,W)

    x_in = jnp.concatenate([x, ebs], axis=1)                       # (B,5,H,W)
    inp_feat = conv2d(p["fe_w"], x_in)                             # 5 -> 3

    edge1 = _edge_net_call(p["edge1"], x_in)                       # (B,5,H,W)
    x_b1 = jnp.concatenate([x_in + edge1, detail_e], axis=1)       # (B,6,H,W)
    out1 = semantic_fusion(p["fusion1"], x_b1, masks)              # (B,1,H,W)
    out1f = conv2d(p["conv1_1_w"], out1)
    dn1 = out1f + x
    fe1 = conv2d(p["conv1_2_w"], out1f)
    atm = conv2d(p["conv1_3_w"], dn1, activation="sigmoid")
    fe1 = fe1 * atm + out1

    edge2 = _edge_net_call(p["edge2"], edge1 + x_in)
    x_b2 = jnp.concatenate([dn1, ebs], axis=1) + edge2             # (B,5,H,W)
    x_b2 = jnp.concatenate([x_b2, fe1, detail_e], axis=1)          # (B,7,H,W)
    out2 = semantic_fusion(p["fusion2"], x_b2, masks)
    out2f = conv2d(p["conv2_1_w"], out2)
    dn2 = out2f + x
    fe2 = conv2d(p["conv2_2_w"], out2f)
    atm2 = conv2d(p["conv2_3_w"], dn2, activation="sigmoid")
    fe2 = fe2 * atm2 + out2

    edge3 = _edge_net_call(p["edge3"], edge2 + x_in)
    x_b3 = jnp.concatenate([dn2, ebs], axis=1) + edge3             # (B,5,H,W)
    x_b3 = jnp.concatenate([x_b3, fe2, detail_e], axis=1)          # (B,7,H,W)
    out3 = semantic_fusion(p["fusion3"], x_b3, masks)

    out_f = jnp.concatenate([out1, out2, out3], axis=1)            # (B,3,H,W)
    b_out = conv2d(p["fe2_w"], out_f) + inp_feat                   # 3 -> 3
    edge_sobel = conv2d(p["edge_extractor_w"], edge3)              # 5 -> 4
    out_f = jnp.concatenate([b_out, edge_sobel], axis=1)           # (B,7,H,W)
    out = conv2d(p["recon_hi_w"], out_f)                           # 7 -> 1
    out = jnp.concatenate([detail_e, out], axis=1)                 # (B,2,H,W)
    out = conv2d(p["recon_hi2_w"], out)                            # 2 -> 1
    out = out + x

    add_d = lambda t: t[:, :, None]                                # restore D=1
    return add_d(out), add_d(edge_sobel), add_d(dn1), add_d(dn2)


# ----------------------------------------------------------------------------
# Deterministic parameter initialization
# ----------------------------------------------------------------------------
class ParamGen:
    def __init__(self, seed):
        self._key = jax.random.PRNGKey(seed)

    def _next(self):
        self._key, sub = jax.random.split(self._key)
        return sub

    def uniform(self, shape, bound):
        return jax.random.uniform(self._next(), shape, jnp.float32, -bound, bound)

    def conv(self, cout, cin, kh=3, kw=3):
        b = 1.0 / math.sqrt(cin * kh * kw)
        return self.uniform((cout, cin, kh, kw), b)

    def bias(self, cout, fan_in):
        return self.uniform((cout,), 1.0 / math.sqrt(fan_in))


def make_params(seed=42):
    pg = ParamGen(seed)
    cw = pg.conv

    def residual_params():
        return {"c1": cw(8, 8), "c2": cw(8, 8)}

    def dense_params():
        return {"res1": residual_params(), "res2": residual_params(),
                "res3": residual_params(), "res4": residual_params(),
                "conv": cw(8, 32)}

    def edge_net_params():
        return {"conv1": cw(8, 5), "r1": residual_params(),
                "d1": dense_params(), "d2": dense_params(),
                "r2": residual_params(), "conv2": cw(5, 8)}

    def kbb_params(c=6, nset=6, k=3, gc=4):
        g = c // gc  # = 1
        dw, ffn = 2 * c, 2 * c
        return {
            "kb_w": pg.uniform((1, nset, c * (c // g) * k * k),
                               1.0 / math.sqrt(c * (c // g) * k * k)),
            "kb_b": pg.uniform((1, nset, c), 1.0 / math.sqrt(c)),
            "norm1_w": jnp.ones((c,), jnp.float32),
            "norm1_b": jnp.zeros((c,), jnp.float32),
            "norm2_w": jnp.ones((c,), jnp.float32),
            "norm2_b": jnp.zeros((c,), jnp.float32),
            "sca_w": cw(c, c, 1, 1), "sca_b": pg.bias(c, c),
            "conv11_0_w": cw(c, c, 1, 1), "conv11_0_b": pg.bias(c, c),
            "conv11_1_w": cw(c, 1, 3, 3), "conv11_1_b": pg.bias(c, 9),
            "conv1_w": cw(c, c, 1, 1), "conv1_b": pg.bias(c, c),
            "conv21_w": cw(c, 1, 3, 3), "conv21_b": pg.bias(c, 9),
            "conv2_0_w": cw(c, 1, 3, 3), "conv2_0_b": pg.bias(c, 9),
            "conv2_2_w": cw(nset, c // 2, 1, 1), "conv2_2_b": pg.bias(nset, c // 2),
            "conv211_w": cw(nset, c, 1, 1), "conv211_b": pg.bias(nset, c),
            "conv3_w": cw(c, dw // 2, 1, 1), "conv3_b": pg.bias(c, dw // 2),
            "conv4_w": cw(ffn, c, 1, 1), "conv4_b": pg.bias(ffn, c),
            "conv5_w": cw(c, ffn // 2, 1, 1), "conv5_b": pg.bias(c, ffn // 2),
            "ga1": jnp.full((1, c, 1, 1), 0.01, jnp.float32),
            "attgamma": jnp.full((1, nset, 1, 1), 0.01, jnp.float32),
            "beta": jnp.full((1, c, 1, 1), 0.01, jnp.float32),
            "gamma": jnp.full((1, c, 1, 1), 0.01, jnp.float32),
        }

    def fusion_params(in_c):
        return {"conv_w": cw(3, in_c), "mask_conv_w": cw(3, 3),
                "fconv1_w": cw(6, in_c), "kba": kbb_params(),
                "fconv2_w": cw(6, 6), "bconv_w": cw(3, 6),
                "fe_conv0_w": cw(3, 3), "fe_conv1_w": cw(1, 3)}

    return {
        "fe_w": cw(3, 5), "fe2_w": cw(3, 3),
        "edge_extractor_w": cw(4, 5),
        "recon_hi_w": cw(1, 7), "recon_hi2_w": cw(1, 2),
        "conv1_1_w": cw(1, 1, 1, 1), "conv1_2_w": cw(1, 1, 1, 1),
        "conv1_3_w": cw(1, 1, 1, 1), "conv2_1_w": cw(1, 1, 1, 1),
        "conv2_2_w": cw(1, 1, 1, 1), "conv2_3_w": cw(1, 1, 1, 1),
        "edge1": edge_net_params(), "edge2": edge_net_params(),
        "edge3": edge_net_params(),
        "fusion1": fusion_params(6), "fusion2": fusion_params(7),
        "fusion3": fusion_params(7),
    }


# ----------------------------------------------------------------------------
if __name__ == "__main__":
    B, H, W = 2, 16, 16
    key = jax.random.PRNGKey(0)
    kx, km = jax.random.split(key)
    x = jax.random.uniform(kx, (B, 1, 1, H, W), jnp.float32)
    masks = jax.random.uniform(km, (B, 3, 1, H, W), jnp.float32)

    params = make_params()
    outs = bilateral_deep_net(params, x, masks)
    outs = jax.block_until_ready(outs)
    out, edge_sobel, dn1, dn2 = outs
    assert out.shape == (B, 1, 1, H, W)
    assert edge_sobel.shape == (B, 4, 1, H, W)
    assert dn1.shape == (B, 1, 1, H, W) and dn2.shape == (B, 1, 1, H, W)
    assert all(bool(jnp.all(jnp.isfinite(t))) for t in outs)
    print("KERNEL_OK")
</pallas_src>

<mosaic_0001>
module attributes {stable_mosaic.version = 11 : i64} {
  func.func @_conv3x3_kernel(%arg0: i32, %arg1: memref<1x8x362xf32, #tpu.memory_space<vmem>>, %arg2: memref<4x72xf32, #tpu.memory_space<vmem>>, %arg3: memref<4x1xf32, #tpu.memory_space<vmem>>, %arg4: memref<1x4x324xf32, #tpu.memory_space<vmem>>, %arg5: memref<72x324xf32, #tpu.memory_space<vmem>>) attributes {dimension_semantics = [#tpu.dimension_semantics<parallel>], iteration_bounds = array<i64: 2>, scalar_prefetch = 0 : i64, scratch_operands = 1 : i64, tpu.core_type = #tpu.core_type<tc>, window_params = [{transform_indices = @transform_0, window_bounds = array<i64: 1, 8, 362>}, {pipeline_mode = #tpu.pipeline_mode<synchronous>, transform_indices = @transform_1, window_bounds = array<i64: 4, 72>}, {pipeline_mode = #tpu.pipeline_mode<synchronous>, transform_indices = @transform_2, window_bounds = array<i64: 4, 1>}, {transform_indices = @transform_3, window_bounds = array<i64: 1, 4, 324>}]} {
    %c0 = arith.constant 0 : index
    %c0_0 = arith.constant 0 : index
    %c0_1 = arith.constant 0 : index
    %0 = vector.load %arg1[%c0, %c0_0, %c0_1] : memref<1x8x362xf32, #tpu.memory_space<vmem>>, vector<1x8x324xf32>
    %1 = vector.shape_cast %0 : vector<1x8x324xf32> to vector<8x324xf32>
    %c0_2 = arith.constant 0 : index
    %c0_3 = arith.constant 0 : index
    %2 = vector.load %arg5[%c0_2, %c0_3] : memref<72x324xf32, #tpu.memory_space<vmem>>, vector<8x324xf32>
    tpu.vector_store %arg5[%c0_2, %c0_3], %1 {strides = array<i32>} : memref<72x324xf32, #tpu.memory_space<vmem>>, vector<8x324xf32>,
    %c0_4 = arith.constant 0 : index
    %c0_5 = arith.constant 0 : index
    %c1 = arith.constant 1 : index
    %3 = vector.load %arg1[%c0_4, %c0_5, %c1] : memref<1x8x362xf32, #tpu.memory_space<vmem>>, vector<1x8x324xf32>
    %4 = vector.shape_cast %3 : vector<1x8x324xf32> to vector<8x324xf32>
    %c8 = arith.constant 8 : index
    %c0_6 = arith.constant 0 : index
    %5 = vector.load %arg5[%c8, %c0_6] : memref<72x324xf32, #tpu.memory_space<vmem>>, vector<8x324xf32>
    tpu.vector_store %arg5[%c8, %c0_6], %4 {strides = array<i32>} : memref<72x324xf32, #tpu.memory_space<vmem>>, vector<8x324xf32>,
    %c0_7 = arith.constant 0 : index
    %c0_8 = arith.constant 0 : index
    %c2 = arith.constant 2 : index
    %6 = vector.load %arg1[%c0_7, %c0_8, %c2] : memref<1x8x362xf32, #tpu.memory_space<vmem>>, vector<1x8x324xf32>
    %7 = vector.shape_cast %6 : vector<1x8x324xf32> to vector<8x324xf32>
    %c16 = arith.constant 16 : index
    %c0_9 = arith.constant 0 : index
    %8 = vector.load %arg5[%c16, %c0_9] : memref<72x324xf32, #tpu.memory_space<vmem>>, vector<8x324xf32>
    tpu.vector_store %arg5[%c16, %c0_9], %7 {strides = array<i32>} : memref<72x324xf32, #tpu.memory_space<vmem>>, vector<8x324xf32>,
    %c0_10 = arith.constant 0 : index
    %c0_11 = arith.constant 0 : index
    %c18 = arith.constant 18 : index
    %9 = vector.load %arg1[%c0_10, %c0_11, %c18] : memref<1x8x362xf32, #tpu.memory_space<vmem>>, vector<1x8x324xf32>
    %10 = vector.shape_cast %9 : vector<1x8x324xf32> to vector<8x324xf32>
    %c24 = arith.constant 24 : index
    %c0_12 = arith.constant 0 : index
    %11 = vector.load %arg5[%c24, %c0_12] : memref<72x324xf32, #tpu.memory_space<vmem>>, vector<8x324xf32>
    tpu.vector_store %arg5[%c24, %c0_12], %10 {strides = array<i32>} : memref<72x324xf32, #tpu.memory_space<vmem>>, vector<8x324xf32>,
    %c0_13 = arith.constant 0 : index
    %c0_14 = arith.constant 0 : index
    %c19 = arith.constant 19 : index
    %12 = vector.load %arg1[%c0_13, %c0_14, %c19] : memref<1x8x362xf32, #tpu.memory_space<vmem>>, vector<1x8x324xf32>
    %13 = vector.shape_cast %12 : vector<1x8x324xf32> to vector<8x324xf32>
    %c32 = arith.constant 32 : index
    %c0_15 = arith.constant 0 : index
    %14 = vector.load %arg5[%c32, %c0_15] : memref<72x324xf32, #tpu.memory_space<vmem>>, vector<8x324xf32>
    tpu.vector_store %arg5[%c32, %c0_15], %13 {strides = array<i32>} : memref<72x324xf32, #tpu.memory_space<vmem>>, vector<8x324xf32>,
    %c0_16 = arith.constant 0 : index
    %c0_17 = arith.constant 0 : index
    %c20 = arith.constant 20 : index
    %15 = vector.load %arg1[%c0_16, %c0_17, %c20] : memref<1x8x362xf32, #tpu.memory_space<vmem>>, vector<1x8x324xf32>
    %16 = vector.shape_cast %15 : vector<1x8x324xf32> to vector<8x324xf32>
    %c40 = arith.constant 40 : index
    %c0_18 = arith.constant 0 : index
    %17 = vector.load %arg5[%c40, %c0_18] : memref<72x324xf32, #tpu.memory_space<vmem>>, vector<8x324xf32>
    tpu.vector_store %arg5[%c40, %c0_18], %16 {strides = array<i32>} : memref<72x324xf32, #tpu.memory_space<vmem>>, vector<8x324xf32>,
    %c0_19 = arith.constant 0 : index
    %c0_20 = arith.constant 0 : index
    %c36 = arith.constant 36 : index
    %18 = vector.load %arg1[%c0_19, %c0_20, %c36] : memref<1x8x362xf32, #tpu.memory_space<vmem>>, vector<1x8x324xf32>
    %19 = vector.shape_cast %18 : vector<1x8x324xf32> to vector<8x324xf32>
    %c48 = arith.constant 48 : index
    %c0_21 = arith.constant 0 : index
    %20 = vector.load %arg5[%c48, %c0_21] : memref<72x324xf32, #tpu.memory_space<vmem>>, vector<8x324xf32>
    tpu.vector_store %arg5[%c48, %c0_21], %19 {strides = array<i32>} : memref<72x324xf32, #tpu.memory_space<vmem>>, vector<8x324xf32>,
    %c0_22 = arith.constant 0 : index
    %c0_23 = arith.constant 0 : index
    %c37 = arith.constant 37 : index
    %21 = vector.load %arg1[%c0_22, %c0_23, %c37] : memref<1x8x362xf32, #tpu.memory_space<vmem>>, vector<1x8x324xf32>
    %22 = vector.shape_cast %21 : vector<1x8x324xf32> to vector<8x324xf32>
    %c56 = arith.constant 56 : index
    %c0_24 = arith.constant 0 : index
    %23 = vector.load %arg5[%c56, %c0_24] : memref<72x324xf32, #tpu.memory_space<vmem>>, vector<8x324xf32>
    tpu.vector_store %arg5[%c56, %c0_24], %22 {strides = array<i32>} : memref<72x324xf32, #tpu.memory_space<vmem>>, vector<8x324xf32>,
    %c0_25 = arith.constant 0 : index
    %c0_26 = arith.constant 0 : index
    %c38 = arith.constant 38 : index
    %24 = vector.load %arg1[%c0_25, %c0_26, %c38] : memref<1x8x362xf32, #tpu.memory_space<vmem>>, vector<1x8x324xf32>
    %25 = vector.shape_cast %24 : vector<1x8x324xf32> to vector<8x324xf32>
    %c64 = arith.constant 64 : index
    %c0_27 = arith.constant 0 : index
    %26 = vector.load %arg5[%c64, %c0_27] : memref<72x324xf32, #tpu.memory_space<vmem>>, vector<8x324xf32>
    tpu.vector_store %arg5[%c64, %c0_27], %25 {strides = array<i32>} : memref<72x324xf32, #tpu.memory_space<vmem>>, vector<8x324xf32>,
    %c0_28 = arith.constant 0 : index
    %c0_29 = arith.constant 0 : index
    %27 = vector.load %arg2[%c0_28, %c0_29] : memref<4x72xf32, #tpu.memory_space<vmem>>, vector<4x72xf32>
    %c0_30 = arith.constant 0 : index
    %c0_31 = arith.constant 0 : index
    %28 = vector.load %arg5[%c0_30, %c0_31] : memref<72x324xf32, #tpu.memory_space<vmem>>, vector<72x324xf32>
    %cst = arith.constant dense<0.000000e+00> : vector<4x324xf32>
    %29 = tpu.matmul %27, %28, %cst {dimension_numbers = #tpu.dot_dimension_numbers<[1], [0], [0], [1], [0, 0, 1, 1], [], []>} : vector<4x72xf32>, vector<72x324xf32>, vector<4x324xf32> -> vector<4x324xf32>
    %c0_32 = arith.constant 0 : index
    %c0_33 = arith.constant 0 : index
    %30 = vector.load %arg3[%c0_32, %c0_33] : memref<4x1xf32, #tpu.memory_space<vmem>>, vector<4x1xf32>
    %31 = vector.broadcast %30 : vector<4x1xf32> to vector<4x324xf32>
    %32 = arith.addf %29, %31 : vector<4x324xf32>
    %c0_34 = arith.constant 0 : index
    %c0_35 = arith.constant 0 : index
    %c0_36 = arith.constant 0 : index
    %33 = vector.load %arg4[%c0_34, %c0_35, %c0_36] : memref<1x4x324xf32, #tpu.memory_space<vmem>>, vector<1x4x324xf32>
    %34 = vector.shape_cast %33 : vector<1x4x324xf32> to vector<4x324xf32>
    %35 = vector.shape_cast %32 : vector<4x324xf32> to vector<1x4x324xf32>
    tpu.vector_store %arg4[%c0_34, %c0_35, %c0_36], %35 {strides = array<i32>} : memref<1x4x324xf32, #tpu.memory_space<vmem>>, vector<1x4x324xf32>,
    return
  }
  func.func @transform_0(%arg0: i32) -> (i32, i32, i32) {
    %c0_i32 = arith.constant 0 : i32
    %c0_i32_0 = arith.constant 0 : i32
    %c0_i32_1 = arith.constant 0 : i32
    return %arg0, %c0_i32, %c0_i32_0 : i32, i32, i32
  }
  func.func @transform_1(%arg0: i32) -> (i32, i32) {
    %c0_i32 = arith.constant 0 : i32
    %c0_i32_0 = arith.constant 0 : i32
    %c0_i32_1 = arith.constant 0 : i32
    return %c0_i32, %c0_i32_0 : i32, i32
  }
  func.func @transform_2(%arg0: i32) -> (i32, i32) {
    %c0_i32 = arith.constant 0 : i32
    %c0_i32_0 = arith.constant 0 : i32
    %c0_i32_1 = arith.constant 0 : i32
    return %c0_i32, %c0_i32_0 : i32, i32
  }
  func.func @transform_3(%arg0: i32) -> (i32, i32, i32) {
    %c0_i32 = arith.constant 0 : i32
    %c0_i32_0 = arith.constant 0 : i32
    %c0_i32_1 = arith.constant 0 : i32
    return %arg0, %c0_i32, %c0_i32_0 : i32, i32, i32
  }
}

</mosaic_0001>

<llo_original>
// kernel: _conv3x3_call.1
$region0: #{_conv3x3_call.1}
  #allocation0 [shape = 'u32[]', space=smem, size = 0x4, offset = 0x4, fixed_abs, tag = 'smem constant byte address 0x4 - core index']
  #allocation1 [shape = 'u32[144,128]{1,0:T(1,128)}', space=vmem, size = 0x12000, scoped, tag = 'internal scratch']
  #allocation2 [shape = 'f32[72,324]{1,0:T(8,128)}', space=vmem, size = 0x1b000, scoped, tag = 'scratch operand']
  %s0 = inlined_call_operand.vmem [shape: f32[2,8,362], index: 0, kind: input, shape index: {}]
  %s1 = inlined_call_operand.vmem [shape: f32[4,72], index: 1, kind: input, shape index: {}]
  %s2 = inlined_call_operand.vmem [shape: f32[4,1], index: 2, kind: input, shape index: {}]
  %s3 = inlined_call_operand.vmem [shape: f32[2,4,324], index: 3, kind: output, shape index: {}]
  %s4 = sld [smem:[#allocation0]]
  $region45: #{_conv3x3_call.1} parent=0
    _
  %s6 = ssub.s32 1, %s4
  %s7 = scalar_select 0, %s6, %s4
  loop: start=0, step=1, limit=4
  $region2: #{_conv3x3_call.1} parent=0 // loop_pre_header
    _
  $region3: #{_conv3x3_call.1} parent=0 // loop_header
    %s9 = sphi 0, %s13
    %p10 = scmp.ge.s32.totalorder %s9, 4
    %s19 = sphi 0, %s21
    %s22 = sphi 0, %s19
    %s23 = sphi 0, %s22
    %s39 = sphi 0, %s23
    %s43 = sphi 0, %s43
    %s45 = sphi 0, %s43
    %s46 = sphi 0, %s45
    %s60 = sphi 0, %s46
    %s64 = sphi 0, %s64
    %s66 = sphi 0, %s64
    %s67 = sphi 0, %s66
    %s81 = sphi 0, %s67
    %s87 = sphi 0, %s89
    %s90 = sphi 0, %s87
    %s91 = sphi 0, %s90
    %s107 = sphi 0, %s91
  $region4: #{_conv3x3_call.1} parent=0 // loop_header_branch
    %12 = sbr.rel (%p10) target = $region8
  $region5: #{_conv3x3_call.1} parent=0 // loop_body
    %s14 = ssub.s32 %s9, 1
    %s15 = ssub.s32 %s9, 2
    %s16 = sadd.s32 %s9, 1
    %s17 = ssub.s32 %s9, %s16
    %p18 = scmp.eq.s32.totalorder %s17, 0
    %s20 = sadd.s32 %s19, 1
    %s21 = scalar_select %p18, %s19, %s20
    %p24 = pneg %p18
    %p25 = scmp.eq.s32.totalorder %s9, 1
    %p26 = por %p24, %p25
    %p27 = scmp.ne.s32.totalorder %s19, %s22
    %p28 = scmp.eq.s32.totalorder %s9, 0
    %p29 = por %p27, %p28
    %p30 = scmp.ne.s32.totalorder %s19, %s22
    %p31 = scmp.eq.s32.totalorder %s14, 1
    %p32 = por %p30, %p31
    %p33 = scmp.ne.s32.totalorder %s22, %s23
    %p34 = scmp.eq.s32.totalorder %s14, 0
    %p35 = por %p33, %p34
    %p36 = scmp.ne.s32.totalorder %s22, %s23
    %p37 = scmp.eq.s32.totalorder %s15, 1
    %p38 = por %p36, %p37
    %p40 = scmp.ne.s32.totalorder %s23, %s39
    %p41 = scmp.eq.s32.totalorder %s15, 0
    %p42 = por %p40, %p41
    %s44 = sadd.s32 %s43, 1
    %p47 = scmp.eq.s32.totalorder %s9, 1
    %p48 = scmp.ne.s32.totalorder %s43, %s45
    %p49 = scmp.eq.s32.totalorder %s9, 0
    %p50 = por %p48, %p49
    %p51 = scmp.ne.s32.totalorder %s43, %s45
    %p52 = scmp.eq.s32.totalorder %s14, 1
    %p53 = por %p51, %p52
    %p54 = scmp.ne.s32.totalorder %s45, %s46
    %p55 = scmp.eq.s32.totalorder %s14, 0
    %p56 = por %p54, %p55
    %p57 = scmp.ne.s32.totalorder %s45, %s46
    %p58 = scmp.eq.s32.totalorder %s15, 1
    %p59 = por %p57, %p58
    %p61 = scmp.ne.s32.totalorder %s46, %s60
    %p62 = scmp.eq.s32.totalorder %s15, 0
    %p63 = por %p61, %p62
    %s65 = sadd.s32 %s64, 1
    %p68 = scmp.eq.s32.totalorder %s9, 1
    %p69 = scmp.ne.s32.totalorder %s64, %s66
    %p70 = scmp.eq.s32.totalorder %s9, 0
    %p71 = por %p69, %p70
    %p72 = scmp.ne.s32.totalorder %s64, %s66
    %p73 = scmp.eq.s32.totalorder %s14, 1
    %p74 = por %p72, %p73
    %p75 = scmp.ne.s32.totalorder %s66, %s67
    %p76 = scmp.eq.s32.totalorder %s14, 0
    %p77 = por %p75, %p76
    %p78 = scmp.ne.s32.totalorder %s66, %s67
    %p79 = scmp.eq.s32.totalorder %s15, 1
    %p80 = por %p78, %p79
    %p82 = scmp.ne.s32.totalorder %s67, %s81
    %p83 = scmp.eq.s32.totalorder %s15, 0
    %p84 = por %p82, %p83
    %s85 = ssub.s32 %s9, %s16
    %p86 = scmp.eq.s32.totalorder %s85, 0
    %s88 = sadd.s32 %s87, 1
    %s89 = scalar_select %p86, %s87, %s88
    %p92 = pneg %p86
    %p93 = scmp.eq.s32.totalorder %s9, 1
    %p94 = por %p92, %p93
    %p95 = scmp.ne.s32.totalorder %s87, %s90
    %p96 = scmp.eq.s32.totalorder %s9, 0
    %p97 = por %p95, %p96
    %p98 = scmp.ne.s32.totalorder %s87, %s90
    %p99 = scmp.eq.s32.totalorder %s14, 1
    %p100 = por %p98, %p99
    %p101 = scmp.ne.s32.totalorder %s90, %s91
    %p102 = scmp.eq.s32.totalorder %s14, 0
    %p103 = por %p101, %p102
    %p104 = scmp.ne.s32.totalorder %s90, %s91
    %p105 = scmp.eq.s32.totalorder %s15, 1
    %p106 = por %p104, %p105
    %p108 = scmp.ne.s32.totalorder %s91, %s107
    %p109 = scmp.eq.s32.totalorder %s15, 0
    %p110 = por %p108, %p109
    %p111 = scmp.le.s32.totalorder 1, %s9
    %p112 = scmp.lt.s32.totalorder %s9, 3
    %p113 = pnand %p111, %p112
    %p114 = pneg %p113
    // Predicated region
    $region9: #{_conv3x3_call.1} parent=5 // pred_check
      _
    $region10: #{_conv3x3_call.1} parent=5 // pred_check_branch
      %116 = sbr.rel (%p113) target = $region12
    $region11: #{_conv3x3_call.1} parent=5 // pred_region
      %s117 = ssub.s32 %s9, 1
      // Predicated region
      $region13: #{_conv3x3_call.1} parent=11 // pred_check
        %p118 = pneg %p56
      $region14: #{_conv3x3_call.1} parent=11 // pred_check_branch
        %120 = sbr.rel (%p118) target = $region16
      $region15: #{_conv3x3_call.1} parent=11 // pred_region
        _
      $region16: #{_conv3x3_call.1} parent=11 // pred_fallthru
        _
      // Predicated region
      $region17: #{_conv3x3_call.1} parent=11 // pred_check
        %p121 = pneg %p77
      $region18: #{_conv3x3_call.1} parent=11 // pred_check_branch
        %123 = sbr.rel (%p121) target = $region20
      $region19: #{_conv3x3_call.1} parent=11 // pred_region
        _
      $region20: #{_conv3x3_call.1} parent=11 // pred_fallthru
        _
    $region12: #{_conv3x3_call.1} parent=5 // pred_fallthru
      _
    %p124 = scmp.lt.s32.totalorder %s9, 2
    // Predicated region
    $region21: #{_conv3x3_call.1} parent=5 // pred_check
      %p125 = pneg %p124
    $region22: #{_conv3x3_call.1} parent=5 // pred_check_branch
      %127 = sbr.rel (%p125) target = $region24
    $region23: #{_conv3x3_call.1} parent=5 // pred_region
      // Predicated region
      $region25: #{_conv3x3_call.1} parent=23 // pred_check
        %p128 = pneg %p29
      $region26: #{_conv3x3_call.1} parent=23 // pred_check_branch
        %130 = sbr.rel (%p128) target = $region28
      $region27: #{_conv3x3_call.1} parent=23 // pred_region
        %p131 = scmp.lt.s32.totalorder %s9, 1
        %s132 = scalar_select %p131, %s9, 1
        %s133 = smul.addr %s132, 3
        %s134 = smul.addr %s133, 8
        %s135 = scalar_lea.vmem %s0, %s134
      $region28: #{_conv3x3_call.1} parent=23 // pred_fallthru
        _
    $region24: #{_conv3x3_call.1} parent=5 // pred_fallthru
      _
    %p136 = scmp.le.s32.totalorder 1, %s9
    %p137 = scmp.lt.s32.totalorder %s9, 3
    %p138 = pnand %p136, %p137
    %p139 = pneg %p138
    // Predicated region
    $region29: #{_conv3x3_call.1} parent=5 // pred_check
      _
    $region30: #{_conv3x3_call.1} parent=5 // pred_check_branch
      %141 = sbr.rel (%p138) target = $region32
    $region31: #{_conv3x3_call.1} parent=5 // pred_region
      %s142 = ssub.s32 %s9, 1
      %p143 = scmp.lt.s32.totalorder %s14, 1
      %s144 = scalar_select %p143, %s14, 1
      %s145 = smul.addr %s144, 3
      %s146 = smul.addr %s145, 8
      %s147 = scalar_lea.vmem %s0, %s146
      %p148 = pneg %p35
      %p149 = pneg %p32
      %p150 = pneg %p56
      %p151 = pneg %p53
      %p152 = pneg %p77
      %p153 = pneg %p74
      %p154 = pneg %p103
      %p155 = pneg %p100
      %p156 = scmp.lt.s32.totalorder %s14, 1
      %s157 = scalar_select %p156, %s14, 1
      %s158 = smul.addr %s157, 3
      %s159 = smul.addr %s158, 4
      %s160 = scalar_lea.vmem %s3, %s159
      %p161 = scmp.lt.s32.totalorder %s14, 1
      %s162 = scalar_select %p161, %s14, 1
      %s163 = smul.addr %s162, 3
      %s164 = smul.addr %s163, 8
      %s165 = scalar_lea.vmem %s0, %s164
      %p166 = scmp.lt.s32.totalorder %s14, 1
      %s167 = scalar_select %p166, %s14, 1
      %s168 = smul.addr %s167, 3
      %s169 = smul.addr %s168, 4
      %s170 = scalar_lea.vmem %s3, %s169
      %v171 = vld [vmem:[%s165] sm:$0xff]
      %v172 = vld [vmem:[%s165 + $0x8] sm:$0xff]
      %v173 = vld [vmem:[%s165 + $0x10] sm:$0xff]
      %174 = vst [vmem:[#allocation2] sm:$0xff] %v171
      %175 = vst [vmem:[#allocation2 + $0x8] sm:$0xff] %v172
      %vm176 = vcmask 556032
      %177 = vst.msk [vmem:[#allocation2 + $0x10] sm:$0xff] %vm176, %v173
      %v178 = vld [vmem:[%s165] sm:$0xff]
      %v179 = vld [vmem:[%s165 + $0x8] sm:$0xff]
      %v180 = vld [vmem:[%s165 + $0x10] sm:$0xff]
      %184 = vrot.lane.b32.xlu0 %v178, 127
      %v185 = vpop.permute.xlu0 %184
      %186 = vrot.lane.b32.xlu0 %v179, 127
      %v187 = vpop.permute.xlu0 %186
      %188 = vrot.lane.b32.xlu0 %v180, 127
      %v189 = vpop.permute.xlu0 %188
      %vm190 = vcmask 1039360
      %v191 = vsel %vm190, %v185, %v187
      %v192 = vsel %vm190, %v187, %v189
      %196 = vst [vmem:[#allocation2 + $0x18] sm:$0xff] %v191
      %197 = vst [vmem:[#allocation2 + $0x20] sm:$0xff] %v192
      %198 = vst.msk [vmem:[#allocation2 + $0x28] sm:$0xff] %vm176, %v189
      %v199 = vld [vmem:[%s165] sm:$0xff]
      %v200 = vld [vmem:[%s165 + $0x8] sm:$0xff]
      %v201 = vld [vmem:[%s165 + $0x10] sm:$0xff]
      %205 = vrot.lane.b32.xlu0 %v199, 126
      %v206 = vpop.permute.xlu0 %205
      %207 = vrot.lane.b32.xlu0 %v200, 126
      %v208 = vpop.permute.xlu0 %207
      %209 = vrot.lane.b32.xlu0 %v201, 126
      %v210 = vpop.permute.xlu0 %209
      %vm211 = vcmask 1031168
      %v212 = vsel %vm211, %v206, %v208
      %v213 = vsel %vm211, %v208, %v210
      %217 = vst [vmem:[#allocation2 + $0x30] sm:$0xff] %v212
      %218 = vst [vmem:[#allocation2 + $0x38] sm:$0xff] %v213
      %219 = vst.msk [vmem:[#allocation2 + $0x40] sm:$0xff] %vm176, %v210
      %v220 = vld [vmem:[%s165] sm:$0xff]
      %v221 = vld [vmem:[%s165 + $0x8] sm:$0xff]
      %v222 = vld [vmem:[%s165 + $0x10] sm:$0xff]
      %226 = vrot.lane.b32.xlu0 %v220, 110
      %v227 = vpop.permute.xlu0 %226
      %228 = vrot.lane.b32.xlu0 %v221, 110
      %v229 = vpop.permute.xlu0 %228
      %230 = vrot.lane.b32.xlu0 %v222, 110
      %v231 = vpop.permute.xlu0 %230
      %vm232 = vcmask 900096
      %v233 = vsel %vm232, %v227, %v229
      %v234 = vsel %vm232, %v229, %v231
      %238 = vst [vmem:[#allocation2 + $0x48] sm:$0xff] %v233
      %239 = vst [vmem:[#allocation2 + $0x50] sm:$0xff] %v234
      %240 = vst.msk [vmem:[#allocation2 + $0x58] sm:$0xff] %vm176, %v231
      %v241 = vld [vmem:[%s165] sm:$0xff]
      %v242 = vld [vmem:[%s165 + $0x8] sm:$0xff]
      %v243 = vld [vmem:[%s165 + $0x10] sm:$0xff]
      %247 = vrot.lane.b32.xlu0 %v241, 109
      %v248 = vpop.permute.xlu0 %247
      %249 = vrot.lane.b32.xlu0 %v242, 109
      %v250 = vpop.permute.xlu0 %249
      %251 = vrot.lane.b32.xlu0 %v243, 109
      %v252 = vpop.permute.xlu0 %251
      %vm253 = vcmask 891904
      %v254 = vsel %vm253, %v248, %v250
      %v255 = vsel %vm253, %v250, %v252
      %259 = vst [vmem:[#allocation2 + $0x60] sm:$0xff] %v254
      %260 = vst [vmem:[#allocation2 + $0x68] sm:$0xff] %v255
      %261 = vst.msk [vmem:[#allocation2 + $0x70] sm:$0xff] %vm176, %v252
      %v262 = vld [vmem:[%s165] sm:$0xff]
      %v263 = vld [vmem:[%s165 + $0x8] sm:$0xff]
      %v264 = vld [vmem:[%s165 + $0x10] sm:$0xff]
      %268 = vrot.lane.b32.xlu0 %v262, 108
      %v269 = vpop.permute.xlu0 %268
      %270 = vrot.lane.b32.xlu0 %v263, 108
      %v271 = vpop.permute.xlu0 %270
      %272 = vrot.lane.b32.xlu0 %v264, 108
      %v273 = vpop.permute.xlu0 %272
      %vm274 = vcmask 883712
      %v275 = vsel %vm274, %v269, %v271
      %v276 = vsel %vm274, %v271, %v273
      %280 = vst [vmem:[#allocation2 + $0x78] sm:$0xff] %v275
      %281 = vst [vmem:[#allocation2 + $0x80] sm:$0xff] %v276
      %282 = vst.msk [vmem:[#allocation2 + $0x88] sm:$0xff] %vm176, %v273
      %v283 = vld [vmem:[%s165] sm:$0xff]
      %v284 = vld [vmem:[%s165 + $0x8] sm:$0xff]
      %v285 = vld [vmem:[%s165 + $0x10] sm:$0xff]
      %289 = vrot.lane.b32.xlu0 %v283, 92
      %v290 = vpop.permute.xlu0 %289
      %291 = vrot.lane.b32.xlu0 %v284, 92
      %v292 = vpop.permute.xlu0 %291
      %293 = vrot.lane.b32.xlu0 %v285, 92
      %v294 = vpop.permute.xlu0 %293
      %vm295 = vcmask 752640
      %v296 = vsel %vm295, %v290, %v292
      %v297 = vsel %vm295, %v292, %v294
      %301 = vst [vmem:[#allocation2 + $0x90] sm:$0xff] %v296
      %302 = vst [vmem:[#allocation2 + $0x98] sm:$0xff] %v297
      %303 = vst.msk [vmem:[#allocation2 + $0xa0] sm:$0xff] %vm176, %v294
      %v304 = vld [vmem:[%s165] sm:$0xff]
      %v305 = vld [vmem:[%s165 + $0x8] sm:$0xff]
      %v306 = vld [vmem:[%s165 + $0x10] sm:$0xff]
      %310 = vrot.lane.b32.xlu0 %v304, 91
      %v311 = vpop.permute.xlu0 %310
      %312 = vrot.lane.b32.xlu0 %v305, 91
      %v313 = vpop.permute.xlu0 %312
      %314 = vrot.lane.b32.xlu0 %v306, 91
      %v315 = vpop.permute.xlu0 %314
      %vm316 = vcmask 744448
      %v317 = vsel %vm316, %v311, %v313
      %v318 = vsel %vm316, %v313, %v315
      %322 = vst [vmem:[#allocation2 + $0xa8] sm:$0xff] %v317
      %323 = vst [vmem:[#allocation2 + $0xb0] sm:$0xff] %v318
      %324 = vst.msk [vmem:[#allocation2 + $0xb8] sm:$0xff] %vm176, %v315
      %v325 = vld [vmem:[%s165] sm:$0xff]
      %v326 = vld [vmem:[%s165 + $0x8] sm:$0xff]
      %v327 = vld [vmem:[%s165 + $0x10] sm:$0xff]
      %331 = vrot.lane.b32.xlu0 %v325, 90
      %v332 = vpop.permute.xlu0 %331
      %333 = vrot.lane.b32.xlu0 %v326, 90
      %v334 = vpop.permute.xlu0 %333
      %335 = vrot.lane.b32.xlu0 %v327, 90
      %v336 = vpop.permute.xlu0 %335
      %vm337 = vcmask 736256
      %v338 = vsel %vm337, %v332, %v334
      %v339 = vsel %vm337, %v334, %v336
      %343 = vst [vmem:[#allocation2 + $0xc0] sm:$0xff] %v338
      %344 = vst [vmem:[#allocation2 + $0xc8] sm:$0xff] %v339
      %345 = vst.msk [vmem:[#allocation2 + $0xd0] sm:$0xff] %vm176, %v336
      %v346 = vld [vmem:[%s1] sm:$0xf]
      %v347 = vld [vmem:[#allocation2] sm:$0xff]
      %v348 = vld [vmem:[#allocation2 + $0x8] sm:$0xff]
      %v349 = vld [vmem:[#allocation2 + $0x10] sm:$0xff]
      %v350 = vld [vmem:[#allocation2 + $0x18] sm:$0xff]
      %v351 = vld [vmem:[#allocation2 + $0x20] sm:$0xff]
      %v352 = vld [vmem:[#allocation2 + $0x28] sm:$0xff]
      %v353 = vld [vmem:[#allocation2 + $0x30] sm:$0xff]
      %v354 = vld [vmem:[#allocation2 + $0x38] sm:$0xff]
      %v355 = vld [vmem:[#allocation2 + $0x40] sm:$0xff]
      %v356 = vld [vmem:[#allocation2 + $0x48] sm:$0xff]
      %v357 = vld [vmem:[#allocation2 + $0x50] sm:$0xff]
      %v358 = vld [vmem:[#allocation2 + $0x58] sm:$0xff]
      %v359 = vld [vmem:[#allocation2 + $0x60] sm:$0xff]
      %v360 = vld [vmem:[#allocation2 + $0x68] sm:$0xff]
      %v361 = vld [vmem:[#allocation2 + $0x70] sm:$0xff]
      %v362 = vld [vmem:[#allocation2 + $0x78] sm:$0xff]
      %v363 = vld [vmem:[#allocation2 + $0x80] sm:$0xff]
      %v364 = vld [vmem:[#allocation2 + $0x88] sm:$0xff]
      %v365 = vld [vmem:[#allocation2 + $0x90] sm:$0xff]
      %v366 = vld [vmem:[#allocation2 + $0x98] sm:$0xff]
      %v367 = vld [vmem:[#allocation2 + $0xa0] sm:$0xff]
      %v368 = vld [vmem:[#allocation2 + $0xa8] sm:$0xff]
      %v369 = vld [vmem:[#allocation2 + $0xb0] sm:$0xff]
      %v370 = vld [vmem:[#allocation2 + $0xb8] sm:$0xff]
      %v371 = vld [vmem:[#allocation2 + $0xc0] sm:$0xff]
      %v372 = vld [vmem:[#allocation2 + $0xc8] sm:$0xff]
      %v373 = vld [vmem:[#allocation2 + $0xd0] sm:$0xff]
      %v374 = vld [vmem:[%s2] sm:$0xf]
      %376 = vset.pattern.permute.xlu0 0
      %377 = vperm.xlu0 %376, %v374
      %v378 = vpop.permute.xlu0 %377
      %vm380 = vcmask 588800
      %v382 = vsel %vm380, %v346, 0
      %384 = vmatprep.subr.mxu0 0.0
      %385 = vmatpush1.msra.mxu0 0.0
      %386 = vmatprep.subr.mxu0 0.0
      %387 = vmatpush1.msra.mxu0 0.0
      %388 = vmatprep.subr.mxu0 0.0
      %389 = vmatpush1.msra.mxu0 0.0
      %390 = vmatprep.subr.mxu0 0.0
      %391 = vmatpush1.msra.mxu0 0.0
      %392 = vmatprep.subr.mxu0 0.0
      %393 = vmatpush1.msra.mxu0 0.0
      %394 = vmatprep.subr.mxu0 0.0
      %395 = vmatpush1.msra.mxu0 0.0
      %396 = vmatprep.subr.mxu0 0.0
      %397 = vmatpush1.msra.mxu0 0.0
      %398 = vmatprep.subr.mxu0 %v372
      %399 = vmatpush1.msra.mxu0 %v371
      %400 = vmatprep.subr.mxu0 %v369
      %401 = vmatpush1.msra.mxu0 %v368
      %402 = vmatprep.subr.mxu0 %v366
      %403 = vmatpush1.msra.mxu0 %v365
      %404 = vmatprep.subr.mxu0 %v363
      %405 = vmatpush1.msra.mxu0 %v362
      %406 = vmatprep.subr.mxu0 %v360
      %407 = vmatpush1.msra.mxu0 %v359
      %408 = vmatprep.subr.mxu0 %v357
      %409 = vmatpush1.msra.mxu0 %v356
      %410 = vmatprep.subr.mxu0 %v354
      %411 = vmatpush1.msra.mxu0 %v353
      %412 = vmatprep.subr.mxu0 %v351
      %413 = vmatpush1.msra.mxu0 %v350
      %414 = vmatprep.subr.mxu0 %v348
      %415 = vmatpush1.msra.mxu0 %v347
      %416 = vmatprep.subr.mxu0 0.0
      %417 = vmatpush2.msra.mxu0 0.0
      %418 = vmatprep.subr.mxu0 0.0
      %419 = vmatpush2.msra.mxu0 0.0
      %420 = vmatprep.subr.mxu0 0.0
      %421 = vmatpush2.msra.mxu0 0.0
      %422 = vmatprep.subr.mxu0 0.0
      %423 = vmatpush2.msra.mxu0 0.0
      %424 = vmatprep.subr.mxu0 0.0
      %425 = vmatpush2.msra.mxu0 0.0
      %426 = vmatprep.subr.mxu0 0.0
      %427 = vmatpush2.msra.mxu0 0.0
      %428 = vmatprep.subr.mxu0 0.0
      %429 = vmatpush2.msra.mxu0 0.0
      %430 = vmatprep.subr.mxu0 0.0
      %431 = vmatpush2.msra.mxu0 0.0
      %432 = vmatprep.subr.mxu0 0.0
      %433 = vmatpush2.msra.mxu0 0.0
      %434 = vmatprep.subr.mxu0 0.0
      %435 = vmatpush2.msra.mxu0 0.0
      %436 = vmatprep.subr.mxu0 0.0
      %437 = vmatpush2.msra.mxu0 0.0
      %438 = vmatprep.subr.mxu0 0.0
      %439 = vmatpush2.msra.mxu0 0.0
      %440 = vmatprep.subr.mxu0 0.0
      %441 = vmatpush2.msra.mxu0 0.0
      %442 = vmatprep.subr.mxu0 0.0
      %443 = vmatpush2.msra.mxu0 0.0
      %444 = vmatprep.subr.mxu0 0.0
      %445 = vmatpush2.msra.mxu0 0.0
      %446 = vmatprep.subr.mxu0 0.0
      %447 = vmatpush2.msra.mxu0 0.0
      %448 = vmatprep.mubr.f32.mxu0 0.0
      %449 = vmatmul.mubr.f32.gmra.mxu0 %v382
      %v450 = vpop.f32.mrf.mxu0
      %v451 = vadd.f32 %v378, %v450
      %v452 = vpop.f32.mrf.mxu0
      %v453 = vadd.f32 %v378, %v452
      %454 = vdwg.mxu0
      %455 = vmatprep.subr.mxu0 0.0
      %456 = vmatpush1.msra.mxu0 0.0
      %457 = vmatprep.subr.mxu0 0.0
      %458 = vmatpush1.msra.mxu0 0.0
      %459 = vmatprep.subr.mxu0 0.0
      %460 = vmatpush1.msra.mxu0 0.0
      %461 = vmatprep.subr.mxu0 0.0
      %462 = vmatpush1.msra.mxu0 0.0
      %463 = vmatprep.subr.mxu0 0.0
      %464 = vmatpush1.msra.mxu0 0.0
      %465 = vmatprep.subr.mxu0 0.0
      %466 = vmatpush1.msra.mxu0 0.0
      %467 = vmatprep.subr.mxu0 0.0
      %468 = vmatpush1.msra.mxu0 0.0
      %469 = vmatprep.subr.mxu0 0.0
      %470 = vmatpush1.msra.mxu0 %v373
      %471 = vmatprep.subr.mxu0 0.0
      %472 = vmatpush1.msra.mxu0 %v370
      %473 = vmatprep.subr.mxu0 0.0
      %474 = vmatpush1.msra.mxu0 %v367
      %475 = vmatprep.subr.mxu0 0.0
      %476 = vmatpush1.msra.mxu0 %v364
      %477 = vmatprep.subr.mxu0 0.0
      %478 = vmatpush1.msra.mxu0 %v361
      %479 = vmatprep.subr.mxu0 0.0
      %480 = vmatpush1.msra.mxu0 %v358
      %481 = vmatprep.subr.mxu0 0.0
      %482 = vmatpush1.msra.mxu0 %v355
      %483 = vmatprep.subr.mxu0 0.0
      %484 = vmatpush1.msra.mxu0 %v352
      %485 = vmatprep.subr.mxu0 0.0
      %486 = vmatpush1.msra.mxu0 %v349
      %487 = vmatprep.subr.mxu0 0.0
      %488 = vmatpush2.msra.mxu0 0.0
      %489 = vmatprep.subr.mxu0 0.0
      %490 = vmatpush2.msra.mxu0 0.0
      %491 = vmatprep.subr.mxu0 0.0
      %492 = vmatpush2.msra.mxu0 0.0
      %493 = vmatprep.subr.mxu0 0.0
      %494 = vmatpush2.msra.mxu0 0.0
      %495 = vmatprep.subr.mxu0 0.0
      %496 = vmatpush2.msra.mxu0 0.0
      %497 = vmatprep.subr.mxu0 0.0
      %498 = vmatpush2.msra.mxu0 0.0
      %499 = vmatprep.subr.mxu0 0.0
      %500 = vmatpush2.msra.mxu0 0.0
      %501 = vmatprep.subr.mxu0 0.0
      %502 = vmatpush2.msra.mxu0 0.0
      %503 = vmatprep.subr.mxu0 0.0
      %504 = vmatpush2.msra.mxu0 0.0
      %505 = vmatprep.subr.mxu0 0.0
      %506 = vmatpush2.msra.mxu0 0.0
      %507 = vmatprep.subr.mxu0 0.0
      %508 = vmatpush2.msra.mxu0 0.0
      %509 = vmatprep.subr.mxu0 0.0
      %510 = vmatpush2.msra.mxu0 0.0
      %511 = vmatprep.subr.mxu0 0.0
      %512 = vmatpush2.msra.mxu0 0.0
      %513 = vmatprep.subr.mxu0 0.0
      %514 = vmatpush2.msra.mxu0 0.0
      %515 = vmatprep.subr.mxu0 0.0
      %516 = vmatpush2.msra.mxu0 0.0
      %517 = vmatprep.subr.mxu0 0.0
      %518 = vmatpush2.msra.mxu0 0.0
      %519 = vmatprep.mubr.f32.mxu0 0.0
      %520 = vmatmul.mubr.f32.gmra.mxu0 %v382
      %v521 = vpop.f32.mrf.mxu0
      %v522 = vadd.f32 %v378, %v521
      %v523 = vpop.f32.mrf.mxu0
      %524 = vdwg.mxu0
      %v527 = vcombine.low %v451, %v453
      %529 = vst [vmem:[%s170] sm:$0xff] %v527
      %vm530 = vcmask 551936
      %531 = vst.msk [vmem:[%s170 + $0x8] sm:$0xf] %vm530, %v522
      %p532 = scmp.lt.s32.totalorder %s14, 1
      %s533 = scalar_select %p532, %s14, 1
      %s534 = smul.addr %s533, 3
      %s535 = smul.addr %s534, 4
      %s536 = scalar_lea.vmem %s3, %s535
      // Predicated region
      $region33: #{_conv3x3_call.1} parent=31 // pred_check
        %p537 = pneg %p100
      $region34: #{_conv3x3_call.1} parent=31 // pred_check_branch
        %539 = sbr.rel (%p537) target = $region36
      $region35: #{_conv3x3_call.1} parent=31 // pred_region
        _
      $region36: #{_conv3x3_call.1} parent=31 // pred_fallthru
        _
    $region32: #{_conv3x3_call.1} parent=5 // pred_fallthru
      _
    %p540 = scmp.le.s32.totalorder 2, %s9
    // Predicated region
    $region37: #{_conv3x3_call.1} parent=5 // pred_check
      %p541 = pneg %p540
    $region38: #{_conv3x3_call.1} parent=5 // pred_check_branch
      %543 = sbr.rel (%p541) target = $region40
    $region39: #{_conv3x3_call.1} parent=5 // pred_region
      %s544 = ssub.s32 %s9, 2
      // Predicated region
      $region41: #{_conv3x3_call.1} parent=39 // pred_check
        %p545 = pneg %p106
      $region42: #{_conv3x3_call.1} parent=39 // pred_check_branch
        %547 = sbr.rel (%p545) target = $region44
      $region43: #{_conv3x3_call.1} parent=39 // pred_region
        %p548 = scmp.lt.s32.totalorder %s15, 1
        %s549 = scalar_select %p548, %s15, 1
        %s550 = smul.addr %s549, 3
        %s551 = smul.addr %s550, 4
        %s552 = scalar_lea.vmem %s3, %s551
      $region44: #{_conv3x3_call.1} parent=39 // pred_fallthru
        _
    $region40: #{_conv3x3_call.1} parent=5 // pred_fallthru
      _
  $region6: #{_conv3x3_call.1} parent=0 // loop_footer
    %s13 = sadd.s32 1, %s9
  $region7: #{_conv3x3_call.1} parent=0 // loop_footer_branch
    %8 = sbr.rel target = $region3
  $region8: #{_conv3x3_call.1} parent=0 // loop_exit
    _

</llo_original>
